<compile_context>
chip_gen: v7x
topology: tpu7x:2x2x1
jax: 0.10.0
libtpu: 0.0.40
codegen_flags: <defaults>
</compile_context>

<pallas_src>
import functools

import jax
import jax.numpy as jnp
from jax.experimental import pallas as pl
from jax.experimental.pallas import tpu as pltpu


def _round_up(x, m):
    return ((x + m - 1) // m) * m


def _mlp_kernel(x_ref, w1_ref, b1_ref, w2_ref, b2_ref, o_ref):
    # First linear: (tm, d_in) @ (d_in, d_hid_pad); bf16 operands -> MXU, f32 accum.
    h = jnp.dot(x_ref[...], w1_ref[...], preferred_element_type=jnp.float32)
    h = h + b1_ref[...]            # bias + ReLU in f32 on the VPU
    h = jnp.maximum(h, 0.0)
    # Dropout = identity (eval mode).
    # Second linear: (tm, d_hid_pad) @ (d_hid_pad, d_out_eff) + (1, d_out_eff)
    out = jnp.dot(h.astype(jnp.bfloat16), w2_ref[...],
                  preferred_element_type=jnp.float32)
    out = out + b2_ref[...]
    o_ref[...] = out.astype(o_ref.dtype)


@functools.partial(jax.jit,
                   static_argnames=("block_m", "lane_pad_threshold",
                                    "dropout_p", "training"))
def simple_mlp_forward(x, w1, b1, w2, b2, *, block_m=256, lane_pad_threshold=128,
                       dropout_p=0.0, training=False):
    """x: (B, d_input); w1: (d_input, d_hid); b1: (1, d_hid);
    w2: (d_hid, d_out); b2: (1, d_out).  Returns (B, d_out) in x.dtype."""
    if training and dropout_p > 0.0:
        # TODO(synk): implement training-mode dropout with the TPU PRNG.
        raise NotImplementedError("kernel implements eval-mode dropout (identity) only")

    B, d_in = x.shape
    d_hid = w1.shape[1]
    d_out = w2.shape[1]
    out_dtype = x.dtype

    # --- block_m clamped to the batch (multiple of 16 for bf16 sublane packing) ---
    bm = min(block_m, _round_up(B, 16))
    bm = max(16, _round_up(bm, 16))

    # --- one-time operand preparation (outside the kernel) -------------------------
    # Pre-cast the streamed activation and the resident weights to bf16; keep
    # biases in f32 (they are added to the f32 accumulator).
    x_bf = x.astype(jnp.bfloat16)
    w1p = w1.astype(jnp.bfloat16)
    b1p = b1.astype(jnp.float32)
    w2p = w2.astype(jnp.bfloat16)
    b2p = b2.astype(jnp.float32)

    # Zero-pad the hidden dim to a lane-dense multiple of 128 (exact math: the
    # extra W1/b1 columns are zero and the extra W2 rows are zero).
    d_hid_pad = _round_up(d_hid, 128)
    if d_hid_pad != d_hid:
        w1p = jnp.pad(w1p, ((0, 0), (0, d_hid_pad - d_hid)))
        b1p = jnp.pad(b1p, ((0, 0), (0, d_hid_pad - d_hid)))
        w2p = jnp.pad(w2p, ((0, d_hid_pad - d_hid), (0, 0)))

    # Lane-pad the output dim only when it is large and ragged; for small d_out
    # the extra write bytes outweigh the masked-store savings.
    d_out_eff = d_out
    if (d_out % 128 != 0) and (d_out >= lane_pad_threshold):
        d_out_eff = _round_up(d_out, 128)
        w2p = jnp.pad(w2p, ((0, 0), (0, d_out_eff - d_out)))
        b2p = jnp.pad(b2p, ((0, 0), (0, d_out_eff - d_out)))

    # --- batch padding only for ragged tails (at most bm - 1 rows) -----------------
    B_pad = _round_up(B, bm)
    if B_pad != B:
        # TODO(synk): avoid this copy entirely by letting the last grid tile be partial.
        x_bf = jnp.pad(x_bf, ((0, B_pad - B), (0, 0)))

    grid = (B_pad // bm,)

    # --- explicit VMEM budget (double-buffered streamed tiles, single-buffered
    #     resident weights, f32 intermediates) --------------------------------------
    out_isize = jnp.dtype(out_dtype).itemsize
    vmem_bytes = (
        2 * bm * d_in * 2                    # x tile, 2 bufs, bf16
        + 2 * bm * d_out_eff * out_isize     # out tile, 2 bufs
        + d_in * d_hid_pad * 2               # W1 (resident, 1 buf, bf16)
        + d_hid_pad * 4                      # b1
        + d_hid_pad * d_out_eff * 2          # W2
        + d_out_eff * 4                      # b2
        + bm * d_hid_pad * 4                 # f32 intermediate h
        + bm * d_out_eff * 4                 # f32 output accumulator
    )
    vmem_limit = int(min(64 * 1024 * 1024, max(32 * 1024 * 1024, 2 * vmem_bytes)))

    resident = pl.Buffered(1)  # constant index_map -> single VMEM buffer is enough

    out = pl.pallas_call(
        _mlp_kernel,
        out_shape=jax.ShapeDtypeStruct((B_pad, d_out_eff), out_dtype),
        grid_spec=pltpu.PrefetchScalarGridSpec(
            num_scalar_prefetch=0,
            grid=grid,
            in_specs=[
                pl.BlockSpec((bm, d_in), lambda i: (i, 0)),          # x tile (streamed)
                pl.BlockSpec((d_in, d_hid_pad), lambda i: (0, 0),    # W1 (resident)
                             pipeline_mode=resident),
                pl.BlockSpec((1, d_hid_pad), lambda i: (0, 0),       # b1 (resident)
                             pipeline_mode=resident),
                pl.BlockSpec((d_hid_pad, d_out_eff), lambda i: (0, 0),  # W2 (resident)
                             pipeline_mode=resident),
                pl.BlockSpec((1, d_out_eff), lambda i: (0, 0),       # b2 (resident)
                             pipeline_mode=resident),
            ],
            out_specs=pl.BlockSpec((bm, d_out_eff), lambda i: (i, 0)),
        ),
        compiler_params=pltpu.CompilerParams(
            dimension_semantics=("parallel",),
            vmem_limit_bytes=vmem_limit,
        ),
    )(x_bf, w1p, b1p, w2p, b2p)

    if B_pad != B or d_out_eff != d_out:
        out = out[:B, :d_out]
    return out


def init_params(key, d_input, d_hid, d_out, dtype=jnp.float32):
    """Deterministic init mimicking nn.Linear (uniform +/- 1/sqrt(fan_in))."""
    k1, k2, k3, k4 = jax.random.split(key, 4)
    bound1 = 1.0 / (d_input ** 0.5)
    bound2 = 1.0 / (d_hid ** 0.5)
    w1 = jax.random.uniform(k1, (d_input, d_hid), dtype, -bound1, bound1)
    b1 = jax.random.uniform(k2, (1, d_hid), dtype, -bound1, bound1)
    w2 = jax.random.uniform(k3, (d_hid, d_out), dtype, -bound2, bound2)
    b2 = jax.random.uniform(k4, (1, d_out), dtype, -bound2, bound2)
    return w1, b1, w2, b2


if __name__ == "__main__":
    # Small shapes consistent with the module: batch=8, d_input=32, d_hid=64, d_out=16.
    d_input, d_hid, d_out = 32, 64, 16
    batch = 8

    key = jax.random.PRNGKey(0)
    kx, kp = jax.random.split(key)
    x = jax.random.normal(kx, (batch, d_input), jnp.float32)
    w1, b1, w2, b2 = init_params(kp, d_input, d_hid, d_out)

    out = simple_mlp_forward(x, w1, b1, w2, b2)
    out = jax.block_until_ready(out)
    assert out.shape == (batch, d_out)

    # Reference 1: exact mirror of the kernel math (bf16 operands, f32 accum;
    # zero-padded hidden dim contributes exactly zero).
    bf = jnp.bfloat16
    h_ref = jnp.dot(x.astype(bf), w1.astype(bf),
                    preferred_element_type=jnp.float32) + b1
    h_ref = jnp.maximum(h_ref, 0.0)
    ref_bf16 = jnp.dot(h_ref.astype(bf), w2.astype(bf),
                       preferred_element_type=jnp.float32) + b2
    assert jnp.allclose(out, ref_bf16, atol=2e-3, rtol=2e-3), "mismatch vs bf16 reference"

    # Reference 2: full f32 math (eval-mode dropout == identity), loose tolerance
    # since the kernel feeds bf16 operands to the MXU.
    ref_f32 = jnp.maximum(x @ w1 + b1, 0.0) @ w2 + b2
    assert jnp.allclose(out, ref_f32, atol=5e-2, rtol=5e-2), "mismatch vs f32 reference"

    print("KERNEL_OK")
</pallas_src>

<mosaic_0001>
module attributes {stable_mosaic.version = 11 : i64} {
  func.func @_mlp_kernel(%arg0: i32, %arg1: memref<16x32xbf16, #tpu.memory_space<vmem>>, %arg2: memref<32x128xbf16, #tpu.memory_space<vmem>>, %arg3: memref<1x128xf32, #tpu.memory_space<vmem>>, %arg4: memref<128x16xbf16, #tpu.memory_space<vmem>>, %arg5: memref<1x16xf32, #tpu.memory_space<vmem>>, %arg6: memref<16x16xf32, #tpu.memory_space<vmem>>) attributes {dimension_semantics = [#tpu.dimension_semantics<parallel>], iteration_bounds = array<i64: 1>, scalar_prefetch = 0 : i64, scratch_operands = 0 : i64, tpu.core_type = #tpu.core_type<tc>, window_params = [{transform_indices = @transform_0, window_bounds = array<i64: 16, 32>}, {pipeline_mode = #tpu.pipeline_mode<synchronous>, transform_indices = @transform_1, window_bounds = array<i64: 32, 128>}, {pipeline_mode = #tpu.pipeline_mode<synchronous>, transform_indices = @transform_2, window_bounds = array<i64: 1, 128>}, {pipeline_mode = #tpu.pipeline_mode<synchronous>, transform_indices = @transform_3, window_bounds = array<i64: 128, 16>}, {pipeline_mode = #tpu.pipeline_mode<synchronous>, transform_indices = @transform_4, window_bounds = array<i64: 1, 16>}, {transform_indices = @transform_5, window_bounds = array<i64: 16, 16>}]} {
    %c0 = arith.constant 0 : index
    %c0_0 = arith.constant 0 : index
    %0 = vector.load %arg1[%c0, %c0_0] : memref<16x32xbf16, #tpu.memory_space<vmem>>, vector<16x32xbf16>
    %c0_1 = arith.constant 0 : index
    %c0_2 = arith.constant 0 : index
    %1 = vector.load %arg2[%c0_1, %c0_2] : memref<32x128xbf16, #tpu.memory_space<vmem>>, vector<32x128xbf16>
    %cst = arith.constant dense<0.000000e+00> : vector<16x128xf32>
    %2 = tpu.matmul %0, %1, %cst {dimension_numbers = #tpu.dot_dimension_numbers<[1], [0], [0], [1], [0, 0, 1, 1], [], []>} : vector<16x32xbf16>, vector<32x128xbf16>, vector<16x128xf32> -> vector<16x128xf32>
    %c0_3 = arith.constant 0 : index
    %c0_4 = arith.constant 0 : index
    %3 = vector.load %arg3[%c0_3, %c0_4] : memref<1x128xf32, #tpu.memory_space<vmem>>, vector<1x128xf32>
    %4 = vector.broadcast %3 : vector<1x128xf32> to vector<16x128xf32>
    %5 = arith.addf %2, %4 : vector<16x128xf32>
    %cst_5 = arith.constant 0.000000e+00 : f32
    %6 = vector.broadcast %cst_5 : f32 to vector<16x128xf32>
    %7 = arith.maximumf %5, %6 : vector<16x128xf32>
    %8 = arith.truncf %7 : vector<16x128xf32> to vector<16x128xbf16>
    %c0_6 = arith.constant 0 : index
    %c0_7 = arith.constant 0 : index
    %9 = vector.load %arg4[%c0_6, %c0_7] : memref<128x16xbf16, #tpu.memory_space<vmem>>, vector<128x16xbf16>
    %cst_8 = arith.constant dense<0.000000e+00> : vector<16x16xf32>
    %10 = tpu.matmul %8, %9, %cst_8 {dimension_numbers = #tpu.dot_dimension_numbers<[1], [0], [0], [1], [0, 0, 1, 1], [], []>} : vector<16x128xbf16>, vector<128x16xbf16>, vector<16x16xf32> -> vector<16x16xf32>
    %c0_9 = arith.constant 0 : index
    %c0_10 = arith.constant 0 : index
    %11 = vector.load %arg5[%c0_9, %c0_10] : memref<1x16xf32, #tpu.memory_space<vmem>>, vector<1x16xf32>
    %12 = vector.broadcast %11 : vector<1x16xf32> to vector<16x16xf32>
    %13 = arith.addf %10, %12 : vector<16x16xf32>
    %c0_11 = arith.constant 0 : index
    %c0_12 = arith.constant 0 : index
    %14 = vector.load %arg6[%c0_11, %c0_12] : memref<16x16xf32, #tpu.memory_space<vmem>>, vector<16x16xf32>
    tpu.vector_store %arg6[%c0_11, %c0_12], %13 {strides = array<i32>} : memref<16x16xf32, #tpu.memory_space<vmem>>, vector<16x16xf32>,
    return
  }
  func.func @transform_0(%arg0: i32) -> (i32, i32) {
    %c0_i32 = arith.constant 0 : i32
    %c0_i32_0 = arith.constant 0 : i32
    return %arg0, %c0_i32 : i32, i32
  }
  func.func @transform_1(%arg0: i32) -> (i32, i32) {
    %c0_i32 = arith.constant 0 : i32
    %c0_i32_0 = arith.constant 0 : i32
    %c0_i32_1 = arith.constant 0 : i32
    return %c0_i32, %c0_i32_0 : i32, i32
  }
  func.func @transform_2(%arg0: i32) -> (i32, i32) {
    %c0_i32 = arith.constant 0 : i32
    %c0_i32_0 = arith.constant 0 : i32
    %c0_i32_1 = arith.constant 0 : i32
    return %c0_i32, %c0_i32_0 : i32, i32
  }
  func.func @transform_3(%arg0: i32) -> (i32, i32) {
    %c0_i32 = arith.constant 0 : i32
    %c0_i32_0 = arith.constant 0 : i32
    %c0_i32_1 = arith.constant 0 : i32
    return %c0_i32, %c0_i32_0 : i32, i32
  }
  func.func @transform_4(%arg0: i32) -> (i32, i32) {
    %c0_i32 = arith.constant 0 : i32
    %c0_i32_0 = arith.constant 0 : i32
    %c0_i32_1 = arith.constant 0 : i32
    return %c0_i32, %c0_i32_0 : i32, i32
  }
  func.func @transform_5(%arg0: i32) -> (i32, i32) {
    %c0_i32 = arith.constant 0 : i32
    %c0_i32_0 = arith.constant 0 : i32
    return %arg0, %c0_i32 : i32, i32
  }
}

</mosaic_0001>

<llo_original>
// kernel: simple_mlp_forward.1
$region0: #{simple_mlp_forward.1}
  #allocation0 [shape = 'u32[]', space=smem, size = 0x4, offset = 0x4, fixed_abs, tag = 'smem constant byte address 0x4 - core index']
  #allocation1 [shape = 'u32[144,128]{1,0:T(1,128)}', space=vmem, size = 0x12000, scoped, tag = 'internal scratch']
  %s0 = inlined_call_operand.vmem [shape: bf16[16,32], index: 0, kind: input, shape index: {}]
  %s1 = inlined_call_operand.vmem [shape: bf16[32,128], index: 1, kind: input, shape index: {}]
  %s2 = inlined_call_operand.vmem [shape: f32[1,128], index: 2, kind: input, shape index: {}]
  %s3 = inlined_call_operand.vmem [shape: bf16[128,16], index: 3, kind: input, shape index: {}]
  %s4 = inlined_call_operand.vmem [shape: f32[1,16], index: 4, kind: input, shape index: {}]
  %s5 = inlined_call_operand.vmem [shape: f32[16,16], index: 5, kind: output, shape index: {}]
  %s6 = sld [smem:[#allocation0]]
  $region30: #{simple_mlp_forward.1} parent=0
    _
  %s8 = ssub.s32 1, %s6
  %s9 = scalar_select 0, %s8, %s6
  // Predicated region
  $region2: #{simple_mlp_forward.1} parent=0 // pred_check
    _
  $region3: #{simple_mlp_forward.1} parent=0 // pred_check_branch
    %11 = sbr.rel (0) target = $region5
  $region4: #{simple_mlp_forward.1} parent=0 // pred_region
    _
  $region5: #{simple_mlp_forward.1} parent=0 // pred_fallthru
    _
  // Predicated region
  $region6: #{simple_mlp_forward.1} parent=0 // pred_check
    _
  $region7: #{simple_mlp_forward.1} parent=0 // pred_check_branch
    %13 = sbr.rel (0) target = $region9
  $region8: #{simple_mlp_forward.1} parent=0 // pred_region
    _
  $region9: #{simple_mlp_forward.1} parent=0 // pred_fallthru
    _
  // Predicated region
  $region10: #{simple_mlp_forward.1} parent=0 // pred_check
    _
  $region11: #{simple_mlp_forward.1} parent=0 // pred_check_branch
    %15 = sbr.rel (0) target = $region13
  $region12: #{simple_mlp_forward.1} parent=0 // pred_region
    _
  $region13: #{simple_mlp_forward.1} parent=0 // pred_fallthru
    _
  // Predicated region
  $region14: #{simple_mlp_forward.1} parent=0 // pred_check
    _
  $region15: #{simple_mlp_forward.1} parent=0 // pred_check_branch
    %17 = sbr.rel (0) target = $region17
  $region16: #{simple_mlp_forward.1} parent=0 // pred_region
    _
  $region17: #{simple_mlp_forward.1} parent=0 // pred_fallthru
    _
  // Predicated region
  $region18: #{simple_mlp_forward.1} parent=0 // pred_check
    _
  $region19: #{simple_mlp_forward.1} parent=0 // pred_check_branch
    %19 = sbr.rel (0) target = $region21
  $region20: #{simple_mlp_forward.1} parent=0 // pred_region
    _
  $region21: #{simple_mlp_forward.1} parent=0 // pred_fallthru
    _
  %v21 = vld [vmem:[%s0] sm:$0xf]
  %v22 = vld [vmem:[%s0 + $0x4] sm:$0xf]
  %v23 = vld [vmem:[%s1] sm:$0xf]
  %v24 = vld [vmem:[%s1 + $0x4] sm:$0xf]
  %v25 = vld [vmem:[%s1 + $0x8] sm:$0xf]
  %v26 = vld [vmem:[%s1 + $0xc] sm:$0xf]
  %v27 = vld [vmem:[%s2] sm:$0x1]
  %v29 = vlaneseq
  %v30 = vshrl.u32 %v29, 7
  %v31 = vsub.s32 0, %v30
  %v32 = vrot.slane %v27, %v31
  %v36 = vunpack.c.l.b16 %v21
  %v37 = vunpack.c.l.b16 %v22
  %v38 = vpack.c.b16 %v37, %v36
  %v43 = vunpack.c.l.b16 %v23
  %v44 = vunpack.c.l.b16 %v24
  %v45 = vunpack.c.l.b16 %v25
  %v46 = vunpack.c.l.b16 %v26
  %v47 = vpack.c.b16 %v44, %v43
  %v48 = vpack.c.b16 %v46, %v45
  %vm51 = vcmask 261120
  %v53 = vsel %vm51, %v38, 0
  %55 = vmatprep.subr.bf16.mxu0 0
  %56 = vmatpush1.bf16.msra.mxu0 %v47
  %57 = vmatprep.subr.bf16.mxu0 0
  %58 = vmatpush1.bf16.msra.mxu0 %v48
  %59 = vmatprep.subr.bf16.mxu0 0
  %60 = vmatpush1.bf16.msra.mxu0 0
  %61 = vmatprep.subr.bf16.mxu0 0
  %62 = vmatpush1.bf16.msra.mxu0 0
  %63 = vmatprep.subr.bf16.mxu0 0
  %64 = vmatpush1.bf16.msra.mxu0 0
  %65 = vmatprep.subr.bf16.mxu0 0
  %66 = vmatpush1.bf16.msra.mxu0 0
  %67 = vmatprep.subr.bf16.mxu0 0
  %68 = vmatpush1.bf16.msra.mxu0 0
  %69 = vmatprep.subr.bf16.mxu0 0
  %70 = vmatpush1.bf16.msra.mxu0 0
  %71 = vmatprep.subr.bf16.mxu0 0
  %72 = vmatpush1.bf16.msra.mxu0 0
  %73 = vmatprep.subr.bf16.mxu0 0
  %74 = vmatpush1.bf16.msra.mxu0 0
  %75 = vmatprep.subr.bf16.mxu0 0
  %76 = vmatpush1.bf16.msra.mxu0 0
  %77 = vmatprep.subr.bf16.mxu0 0
  %78 = vmatpush1.bf16.msra.mxu0 0
  %79 = vmatprep.subr.bf16.mxu0 0
  %80 = vmatpush1.bf16.msra.mxu0 0
  %81 = vmatprep.subr.bf16.mxu0 0
  %82 = vmatpush1.bf16.msra.mxu0 0
  %83 = vmatprep.subr.bf16.mxu0 0
  %84 = vmatpush1.bf16.msra.mxu0 0
  %85 = vmatprep.subr.bf16.mxu0 0
  %86 = vmatpush1.bf16.msra.mxu0 0
  %87 = vmatprep.mubr.bf16.mxu0 0
  %88 = vmatmul.mubr.bf16.gmra.mrb[0].mxu0 %v53
  %v89 = vpop.f32.mrb[0].mxu0
  %v90 = vadd.f32 %v32, %v89
  %v91 = vpop.f32.mrb[0].mxu0
  %v92 = vpop.f32.mrb[0].mxu0
  %v93 = vadd.f32 %v32, %v92
  %v94 = vpop.f32.mrb[0].mxu0
  %95 = vdwg.mxu0
  %v96 = vmax.f32 %v90, 0.0
  %v97 = vmax.f32 %v93, 0.0
  %v98 = vpack.c.bf16 %v97, %v96
  %v99 = vld [vmem:[%s3] sm:$0xf]
  %v100 = vld [vmem:[%s3 + $0x4] sm:$0xf]
  %v101 = vld [vmem:[%s3 + $0x8] sm:$0xf]
  %v102 = vld [vmem:[%s3 + $0xc] sm:$0xf]
  %v103 = vld [vmem:[%s3 + $0x10] sm:$0xf]
  %v104 = vld [vmem:[%s3 + $0x14] sm:$0xf]
  %v105 = vld [vmem:[%s3 + $0x18] sm:$0xf]
  %v106 = vld [vmem:[%s3 + $0x1c] sm:$0xf]
  %v107 = vld [vmem:[%s3 + $0x20] sm:$0xf]
  %v108 = vld [vmem:[%s3 + $0x24] sm:$0xf]
  %v109 = vld [vmem:[%s3 + $0x28] sm:$0xf]
  %v110 = vld [vmem:[%s3 + $0x2c] sm:$0xf]
  %v111 = vld [vmem:[%s3 + $0x30] sm:$0xf]
  %v112 = vld [vmem:[%s3 + $0x34] sm:$0xf]
  %v113 = vld [vmem:[%s3 + $0x38] sm:$0xf]
  %v114 = vld [vmem:[%s3 + $0x3c] sm:$0xf]
  %v115 = vld [vmem:[%s4] sm:$0x1]
  %v117 = vlaneseq
  %v118 = vshrl.u32 %v117, 7
  %v119 = vsub.s32 0, %v118
  %v120 = vrot.slane %v115, %v119
  %v138 = vunpack.c.l.b16 %v99
  %v139 = vunpack.c.l.b16 %v100
  %v140 = vunpack.c.l.b16 %v101
  %v141 = vunpack.c.l.b16 %v102
  %v142 = vunpack.c.l.b16 %v103
  %v143 = vunpack.c.l.b16 %v104
  %v144 = vunpack.c.l.b16 %v105
  %v145 = vunpack.c.l.b16 %v106
  %v146 = vunpack.c.l.b16 %v107
  %v147 = vunpack.c.l.b16 %v108
  %v148 = vunpack.c.l.b16 %v109
  %v149 = vunpack.c.l.b16 %v110
  %v150 = vunpack.c.l.b16 %v111
  %v151 = vunpack.c.l.b16 %v112
  %v152 = vunpack.c.l.b16 %v113
  %v153 = vunpack.c.l.b16 %v114
  %v154 = vpack.c.b16 %v139, %v138
  %v155 = vpack.c.b16 %v141, %v140
  %v156 = vpack.c.b16 %v143, %v142
  %v157 = vpack.c.b16 %v145, %v144
  %v158 = vpack.c.b16 %v147, %v146
  %v159 = vpack.c.b16 %v149, %v148
  %v160 = vpack.c.b16 %v151, %v150
  %v161 = vpack.c.b16 %v153, %v152
  %170 = vmatprep.subr.bf16.mxu0 0
  %171 = vmatpush1.bf16.msra.mxu0 %v154
  %172 = vmatprep.subr.bf16.mxu0 0
  %173 = vmatpush1.bf16.msra.mxu0 %v155
  %174 = vmatprep.subr.bf16.mxu0 0
  %175 = vmatpush1.bf16.msra.mxu0 %v156
  %176 = vmatprep.subr.bf16.mxu0 0
  %177 = vmatpush1.bf16.msra.mxu0 %v157
  %178 = vmatprep.subr.bf16.mxu0 0
  %179 = vmatpush1.bf16.msra.mxu0 %v158
  %180 = vmatprep.subr.bf16.mxu0 0
  %181 = vmatpush1.bf16.msra.mxu0 %v159
  %182 = vmatprep.subr.bf16.mxu0 0
  %183 = vmatpush1.bf16.msra.mxu0 %v160
  %184 = vmatprep.subr.bf16.mxu0 0
  %185 = vmatpush1.bf16.msra.mxu0 %v161
  %186 = vmatprep.subr.bf16.mxu0 0
  %187 = vmatpush1.bf16.msra.mxu0 0
  %188 = vmatprep.subr.bf16.mxu0 0
  %189 = vmatpush1.bf16.msra.mxu0 0
  %190 = vmatprep.subr.bf16.mxu0 0
  %191 = vmatpush1.bf16.msra.mxu0 0
  %192 = vmatprep.subr.bf16.mxu0 0
  %193 = vmatpush1.bf16.msra.mxu0 0
  %194 = vmatprep.subr.bf16.mxu0 0
  %195 = vmatpush1.bf16.msra.mxu0 0
  %196 = vmatprep.subr.bf16.mxu0 0
  %197 = vmatpush1.bf16.msra.mxu0 0
  %198 = vmatprep.subr.bf16.mxu0 0
  %199 = vmatpush1.bf16.msra.mxu0 0
  %200 = vmatprep.subr.bf16.mxu0 0
  %201 = vmatpush1.bf16.msra.mxu0 0
  %202 = vmatprep.mubr.bf16.mxu0 0
  %203 = vmatmul.mubr.bf16.gmra.mrb[0].mxu0 %v98
  %v204 = vpop.f32.mrb[0].mxu0
  %v205 = vadd.f32 %v120, %v204
  %v206 = vpop.f32.mrb[0].mxu0
  %v207 = vpop.f32.mrb[0].mxu0
  %v208 = vadd.f32 %v120, %v207
  %v209 = vpop.f32.mrb[0].mxu0
  %210 = vdwg.mxu0
  %vm211 = vcmask 130048
  %212 = vst.msk [vmem:[%s5] sm:$0xff] %vm211, %v205
  %213 = vst.msk [vmem:[%s5 + $0x8] sm:$0xff] %vm211, %v208
  // Predicated region
  $region22: #{simple_mlp_forward.1} parent=0 // pred_check
    _
  $region23: #{simple_mlp_forward.1} parent=0 // pred_check_branch
    %215 = sbr.rel (0) target = $region25
  $region24: #{simple_mlp_forward.1} parent=0 // pred_region
    _
  $region25: #{simple_mlp_forward.1} parent=0 // pred_fallthru
    _
  // Predicated region
  $region26: #{simple_mlp_forward.1} parent=0 // pred_check
    _
  $region27: #{simple_mlp_forward.1} parent=0 // pred_check_branch
    %217 = sbr.rel (0) target = $region29
  $region28: #{simple_mlp_forward.1} parent=0 // pred_region
    _
  $region29: #{simple_mlp_forward.1} parent=0 // pred_fallthru
    _

</llo_original>
